<compile_context>
chip_gen: v7x
topology: tpu7x:2x2x1
jax: 0.10.0
libtpu: 0.0.40
codegen_flags: <defaults>
</compile_context>

<pallas_src>
import functools

import jax
import jax.numpy as jnp
from jax import lax
from jax.experimental import pallas as pl
from jax.experimental.pallas import tpu as pltpu

DEFAULT_STD = 0.1

_TARGET_TILE_BYTES = 2 * 1024 * 1024   # ~2 MiB f32 per tile (>=85% HBM roofline; safe
                                       # with double-buffered I/O + f32 temporaries
                                       # inside a 32 MiB scoped-VMEM budget on all gens)
_VMEM_LIMIT_BYTES = 32 * 1024 * 1024   # raises v5e's 16 MiB default; == default v6e/v7x
_SEED_MIX = -1640531535                # 0x9E3779B1 as int32 (Knuth hash multiplier)


def _cdiv(a, b):
    return (a + b - 1) // b


def _round_up(a, b):
    return _cdiv(a, b) * b


def _tile_plan(n_rows, n_cols):
    """Rows per block for a (n_rows, n_cols) slab; block = (tile_rows, n_cols).

    Legality: tile_rows is a multiple of 8 OR equals n_rows (full extent).
    Targets ~2 MiB of f32 per tile and keeps grid >= 2 when the slab is big
    enough, so the 1-D "parallel" grid can use both TensorCores on v7x.
    """
    row_bytes = n_cols * 4            # noise math is f32; plan for the f32 footprint
    target = max(1, _TARGET_TILE_BYTES // row_bytes)
    if target >= n_rows:
        if n_rows >= 16:
            half = _round_up(_cdiv(n_rows, 2), 8)
            if half < n_rows:
                return half           # two-ish blocks -> megacore sharding on v7x
        return n_rows                 # full extent (always legal)
    tile = max(8, (target // 8) * 8)
    return min(tile, n_rows)


# ---------------------------------------------------------------------------
# Kernels
# ---------------------------------------------------------------------------
def _corrupt_tpu_kernel(seed_ref, x_ref, o_ref, *, std):
    """out = x + N(0, std): hardware PRNG + dual-branch Box-Muller.

    Bits are drawn for ceil(rows/2) rows only; both Box-Muller outputs
    (r*cos(theta), r*sin(theta)) fill the tile -> 2 EUP transcendentals and
    half a u32 PRNG draw per element.
    """
    # Independent stream per grid step; mix program_id with a large odd
    # multiplier so adjacent raw seeds don't correlate.
    pltpu.prng_seed(seed_ref[0] + pl.program_id(0) * _SEED_MIX)

    rows, cols = x_ref.shape
    half = (rows + 1) // 2

    bits = pltpu.bitcast(pltpu.prng_random_bits((half, cols)), jnp.int32)
    hi = lax.shift_right_logical(bits, jnp.int32(16))     # 0 .. 65535
    lo = lax.bitwise_and(bits, jnp.int32(0xFFFF))          # 0 .. 65535

    # u1 strictly in (0, 1): (hi + 0.5) / 65536, constants folded into one FMA.
    u1 = hi.astype(jnp.float32) * jnp.float32(1.0 / 65536.0) + jnp.float32(0.5 / 65536.0)
    # theta = 2*pi * lo / 65536, constant pre-folded.
    theta = lo.astype(jnp.float32) * jnp.float32(6.283185307179586 / 65536.0)

    # std folded into the sqrt argument: r = sqrt(-2 * std^2 * log(u1)).
    r = jnp.sqrt(jnp.float32(-2.0 * std * std) * jnp.log(u1))
    noise = jnp.concatenate([r * jnp.cos(theta), r * jnp.sin(theta)], axis=0)
    if 2 * half != rows:
        noise = noise[:rows]

    # f32 math, single cast at the store.
    o_ref[...] = (x_ref[...].astype(jnp.float32) + noise).astype(o_ref.dtype)


def _add_noise_kernel(x_ref, n_ref, o_ref):
    """Fallback (non-TPU backend): noise precomputed on host (f32), added in-kernel."""
    o_ref[...] = (x_ref[...].astype(jnp.float32) + n_ref[...]).astype(o_ref.dtype)


# ---------------------------------------------------------------------------
# pallas_call wrappers
# ---------------------------------------------------------------------------
def _corrupt_tpu(flat, std, seed):
    n_rows, n_cols = flat.shape
    tile_rows = _tile_plan(n_rows, n_cols)
    grid_rows = _cdiv(n_rows, tile_rows)
    n_elems = n_rows * n_cols

    cost = pl.CostEstimate(
        flops=10 * n_elems,
        transcendentals=2 * n_elems,
        bytes_accessed=2 * n_elems * flat.dtype.itemsize,
    )

    return pl.pallas_call(
        functools.partial(_corrupt_tpu_kernel, std=float(std)),
        out_shape=jax.ShapeDtypeStruct(flat.shape, flat.dtype),
        grid_spec=pltpu.PrefetchScalarGridSpec(
            num_scalar_prefetch=1,
            grid=(grid_rows,),
            in_specs=[pl.BlockSpec((tile_rows, n_cols), lambda i, seed_ref: (i, 0))],
            out_specs=pl.BlockSpec((tile_rows, n_cols), lambda i, seed_ref: (i, 0)),
        ),
        # seed is operand 0, the flat slab is operand 1 -> donate it as output 0.
        input_output_aliases={1: 0},
        compiler_params=pltpu.CompilerParams(
            dimension_semantics=("parallel",),
            vmem_limit_bytes=_VMEM_LIMIT_BYTES,
        ),
        cost_estimate=cost,
    )(jnp.asarray([seed], dtype=jnp.int32), flat)


def _corrupt_fallback(flat, std, seed):
    # TODO(synk): pltpu.prng_* has no lowering off-TPU; on non-TPU backends the
    # Gaussian noise is generated with jax.random in f32 and added in a Pallas
    # add-kernel with the same tiling (same semantics, single cast at the store).
    n_rows, n_cols = flat.shape
    tile_rows = _tile_plan(n_rows, n_cols)
    grid_rows = _cdiv(n_rows, tile_rows)
    noise = jnp.float32(std) * jax.random.normal(
        jax.random.PRNGKey(seed), flat.shape, dtype=jnp.float32)
    return pl.pallas_call(
        _add_noise_kernel,
        out_shape=jax.ShapeDtypeStruct(flat.shape, flat.dtype),
        grid=(grid_rows,),
        in_specs=[pl.BlockSpec((tile_rows, n_cols), lambda i: (i, 0)),
                  pl.BlockSpec((tile_rows, n_cols), lambda i: (i, 0))],
        out_specs=pl.BlockSpec((tile_rows, n_cols), lambda i: (i, 0)),
    )(flat, noise)


# ---------------------------------------------------------------------------
# Forward (mirrors LadderFlatternBlock.forward)
# ---------------------------------------------------------------------------
def ladder_flatten_forward(x, *, corrupt=False, training=False,
                           corruption_std=DEFAULT_STD, seed=0):
    """x: (B, C, H, W) -> (B, C*H*W); optionally + N(0, corruption_std) noise."""
    B = x.shape[0]
    flat = x.reshape(B, -1)   # nn.Flatten: pure layout plumbing, no kernel needed.

    if not (corrupt and training):
        # Eval / corrupt=False path: a pass-through kernel would only burn HBM BW.
        return flat

    if jax.default_backend() == "tpu":
        return _corrupt_tpu(flat, corruption_std, seed)
    return _corrupt_fallback(flat, corruption_std, seed)


# ---------------------------------------------------------------------------
# Main
# ---------------------------------------------------------------------------
if __name__ == "__main__":
    key = jax.random.PRNGKey(0)
    B, C, H, W = 2, 4, 16, 16
    x = jax.random.normal(key, (B, C, H, W), dtype=jnp.float32)

    ref = x.reshape(B, C * H * W)

    # Default forward (corrupt=False): pure flatten, no kernel.
    out = ladder_flatten_forward(x)
    out = jax.block_until_ready(out)
    assert out.shape == (B, C * H * W), out.shape
    assert jnp.array_equal(out, ref), "flatten mismatch"

    # Training + corrupt=True path: flatten + Gaussian noise via the Pallas kernel.
    out_c = ladder_flatten_forward(x, corrupt=True, training=True, seed=1234)
    out_c = jax.block_until_ready(out_c)
    assert out_c.shape == (B, C * H * W)
    assert bool(jnp.all(jnp.isfinite(out_c)))
    noise = out_c - ref
    # Noise should be small (std=0.1, |z| <= ~4.7 sigma) but nonzero.
    assert float(jnp.max(jnp.abs(noise))) > 0.0
    assert float(jnp.max(jnp.abs(noise))) < 1.0

    print("KERNEL_OK")
</pallas_src>

<mosaic_0001>
module attributes {stable_mosaic.version = 11 : i64} {
  func.func @_add_noise_kernel(%arg0: i32, %arg1: memref<2x1024xf32, #tpu.memory_space<vmem>>, %arg2: memref<2x1024xf32, #tpu.memory_space<vmem>>, %arg3: memref<2x1024xf32, #tpu.memory_space<vmem>>) attributes {dimension_semantics = [#tpu.dimension_semantics<arbitrary>], iteration_bounds = array<i64: 1>, scalar_prefetch = 0 : i64, scratch_operands = 0 : i64, tpu.core_type = #tpu.core_type<tc>, window_params = [{transform_indices = @transform_0, window_bounds = array<i64: 2, 1024>}, {transform_indices = @transform_1, window_bounds = array<i64: 2, 1024>}, {transform_indices = @transform_2, window_bounds = array<i64: 2, 1024>}]} {
    %c0 = arith.constant 0 : index
    %c0_0 = arith.constant 0 : index
    %0 = vector.load %arg1[%c0, %c0_0] : memref<2x1024xf32, #tpu.memory_space<vmem>>, vector<2x1024xf32>
    %c0_1 = arith.constant 0 : index
    %c0_2 = arith.constant 0 : index
    %1 = vector.load %arg2[%c0_1, %c0_2] : memref<2x1024xf32, #tpu.memory_space<vmem>>, vector<2x1024xf32>
    %2 = arith.addf %0, %1 : vector<2x1024xf32>
    %c0_3 = arith.constant 0 : index
    %c0_4 = arith.constant 0 : index
    %3 = vector.load %arg3[%c0_3, %c0_4] : memref<2x1024xf32, #tpu.memory_space<vmem>>, vector<2x1024xf32>
    tpu.vector_store %arg3[%c0_3, %c0_4], %2 {strides = array<i32>} : memref<2x1024xf32, #tpu.memory_space<vmem>>, vector<2x1024xf32>,
    return
  }
  func.func @transform_0(%arg0: i32) -> (i32, i32) {
    %c0_i32 = arith.constant 0 : i32
    %c0_i32_0 = arith.constant 0 : i32
    return %arg0, %c0_i32 : i32, i32
  }
  func.func @transform_1(%arg0: i32) -> (i32, i32) {
    %c0_i32 = arith.constant 0 : i32
    %c0_i32_0 = arith.constant 0 : i32
    return %arg0, %c0_i32 : i32, i32
  }
  func.func @transform_2(%arg0: i32) -> (i32, i32) {
    %c0_i32 = arith.constant 0 : i32
    %c0_i32_0 = arith.constant 0 : i32
    return %arg0, %c0_i32 : i32, i32
  }
}

</mosaic_0001>

<llo_original>
// kernel: tpu_custom_call.1
$region0: #{tpu_custom_call.1}
  #allocation0 [shape = 'u32[]', space=smem, size = 0x4, offset = 0x4, fixed_abs, tag = 'smem constant byte address 0x4 - core index']
  #allocation1 [shape = 'u32[144,128]{1,0:T(1,128)}', space=vmem, size = 0x12000, scoped, tag = 'internal scratch']
  %s0 = inlined_call_operand.hbm [shape: f32[2,1024], index: 0, kind: input, shape index: {}]
  %s1 = inlined_call_operand.hbm [shape: f32[2,1024], index: 1, kind: input, shape index: {}]
  %s2 = inlined_call_operand.hbm [shape: f32[2,1024], index: 2, kind: output, shape index: {}]
  %s3 = sld [smem:[#allocation0]]
  $region26: #{tpu_custom_call.1} parent=0
    _
  %s5 = ssub.s32 1, %s3
  %s6 = scalar_select 0, %s5, %s3
  $region1: #{tpu_custom_call.1} parent=0
    #allocation2 [shape = 'u8[8192]{0}', space=vmem, size = 0x2000, scoped, tag = 'input window, operand 0, single buffered']
    #allocation3 [shape = 's32[1]{0}', space=sflag, size = 0x4, scoped, tag = 'scoped memory for tpu_custom_call.1']
    #allocation4 [shape = 's32[1]{0}', space=sflag, size = 0x4, scoped, tag = 'scoped memory for tpu_custom_call.1']
    #allocation5 [shape = 'u8[8192]{0}', space=vmem, size = 0x2000, scoped, tag = 'input window, operand 1, single buffered']
    #allocation6 [shape = 's32[1]{0}', space=sflag, size = 0x4, scoped, tag = 'scoped memory for tpu_custom_call.1']
    #allocation7 [shape = 'u8[8192]{0}', space=vmem, size = 0x2000, scoped, tag = 'output window, operand 0, single buffered']
    %7 = vsyncpa [#allocation3], 0
    %8 = vsyncpa [#allocation6], 0
    %9 = vsyncpa [#allocation4], 0
    // Predicated region
    $region2: #{tpu_custom_call.1} parent=1 // pred_check
      _
    $region3: #{tpu_custom_call.1} parent=1 // pred_check_branch
      %11 = sbr.rel (0) target = $region5
    $region4: #{tpu_custom_call.1} parent=1 // pred_region
      %s13 = ssub.s32 256, 256
      %14 = vsyncadd [#allocation3], %s13
      %s16 = sshll.u32 [#allocation2], 4
      %s17 = int_to_ptr.vmem [resolvable:$true] %s16
      %19 = dma.hbm_to_vmem [thread:$0]  %s0, 256, %s17, [#allocation3]
    $region5: #{tpu_custom_call.1} parent=1 // pred_fallthru
      _
    // Predicated region
    $region6: #{tpu_custom_call.1} parent=1 // pred_check
      _
    $region7: #{tpu_custom_call.1} parent=1 // pred_check_branch
      %21 = sbr.rel (0) target = $region9
    $region8: #{tpu_custom_call.1} parent=1 // pred_region
      %s23 = ssub.s32 256, 256
      %24 = vsyncadd [#allocation6], %s23
      %s26 = sshll.u32 [#allocation5], 4
      %s27 = int_to_ptr.vmem [resolvable:$true] %s26
      %29 = dma.hbm_to_vmem [thread:$0]  %s1, 256, %s27, [#allocation6]
    $region9: #{tpu_custom_call.1} parent=1 // pred_fallthru
      _
    // Predicated region
    $region10: #{tpu_custom_call.1} parent=1 // pred_check
      _
    $region11: #{tpu_custom_call.1} parent=1 // pred_check_branch
      %31 = sbr.rel (0) target = $region13
    $region12: #{tpu_custom_call.1} parent=1 // pred_region
      %32 = dma.done [#allocation3], 256
    $region13: #{tpu_custom_call.1} parent=1 // pred_fallthru
      _
    // Predicated region
    $region14: #{tpu_custom_call.1} parent=1 // pred_check
      _
    $region15: #{tpu_custom_call.1} parent=1 // pred_check_branch
      %34 = sbr.rel (0) target = $region17
    $region16: #{tpu_custom_call.1} parent=1 // pred_region
      %35 = dma.done [#allocation6], 256
    $region17: #{tpu_custom_call.1} parent=1 // pred_fallthru
      _
    %v36 = vld [vmem:[#allocation2] sm:$0xff]
    %v37 = vld [vmem:[#allocation2 + $0x8] sm:$0xff]
    %v38 = vld [vmem:[#allocation5] sm:$0xff]
    %v39 = vld [vmem:[#allocation5 + $0x8] sm:$0xff]
    %v40 = vadd.f32 %v36, %v38
    %v41 = vadd.f32 %v37, %v39
    %42 = vst [vmem:[#allocation7] sm:$0xff] %v40
    %43 = vst [vmem:[#allocation7 + $0x8] sm:$0xff] %v41
    // Predicated region
    $region18: #{tpu_custom_call.1} parent=1 // pred_check
      _
    $region19: #{tpu_custom_call.1} parent=1 // pred_check_branch
      %45 = sbr.rel (0) target = $region21
    $region20: #{tpu_custom_call.1} parent=1 // pred_region
      %s47 = ssub.s32 256, 256
      %48 = vsyncadd [#allocation4], %s47
      %s50 = sshll.u32 [#allocation7], 4
      %s51 = int_to_ptr.vmem [resolvable:$true] %s50
      %53 = dma.vmem_to_hbm [thread:$0]  %s51, 256, %s2, [#allocation4]
    $region21: #{tpu_custom_call.1} parent=1 // pred_fallthru
      _
    // Predicated region
    $region22: #{tpu_custom_call.1} parent=1 // pred_check
      _
    $region23: #{tpu_custom_call.1} parent=1 // pred_check_branch
      %55 = sbr.rel (0) target = $region25
    $region24: #{tpu_custom_call.1} parent=1 // pred_region
      %56 = dma.done [#allocation4], 256
    $region25: #{tpu_custom_call.1} parent=1 // pred_fallthru
      _
    %57 = vsyncpa [#allocation3], 1
    %58 = vsyncpa [#allocation6], 1
    %59 = vsyncpa [#allocation4], 1

</llo_original>
